<compile_context>
chip_gen: v5e
topology: v5e:2x2
jax: 0.10.0
libtpu: 0.0.40
codegen_flags: <defaults>
</compile_context>

<pallas_src>
import functools

import jax
import jax.numpy as jnp
from jax import lax
from jax.experimental import pallas as pl
from jax.experimental.pallas import tpu as pltpu

_PREC = jax.lax.Precision.HIGHEST
_EPS = 1e-5


# ------------------------------------------------------------------------
# One-time probe: resolve the sign convention of pltpu.roll so that
# _shift(v, d)[:, m] == v[:, m + d] regardless of library convention.
# ------------------------------------------------------------------------
_ROLL_SIGN = None


def _roll_sign():
    global _ROLL_SIGN
    if _ROLL_SIGN is None:
        def _probe(x_ref, o_ref):
            o_ref[...] = pltpu.roll(x_ref[...], 1, axis=1)

        x = jnp.tile(jnp.arange(128, dtype=jnp.float32)[None, :], (8, 1))
        r = pl.pallas_call(
            _probe, out_shape=jax.ShapeDtypeStruct((8, 128), jnp.float32))(x)
        v = float(r[0, 0])
        # jnp.roll convention: out[0] == 127  -> need shift = -delta
        # flipped convention : out[0] == 1    -> need shift = +delta
        _ROLL_SIGN = 1 if abs(v - 1.0) < 0.5 else -1
    return _ROLL_SIGN


# ------------------------------------------------------------------------
# Fused kernel
# ------------------------------------------------------------------------
def _fused_kernel(x_ref, aux_ref, w1_ref, b1_ref, g_ref, be_ref,
                  wfold_ref, w2r_ref, bf_ref, w3_ref, b3_ref,
                  w4_ref, b4_ref,
                  ycat_ref, o4_ref, tap_ref, *, N, H, W, sgn):
    f32 = jnp.float32
    M = N * H * W
    HW = H * W

    # host-precomputed masks (f32):
    #   rows 0..8 : per-tap boundary masks, (dh, dw) order
    #   row 9     : w_even, row 10 : h_even
    #   rows 11..14: parity selectors (ee, eo, oe, oo)
    aux = aux_ref[...]
    w_even = aux[9:10, :]
    h_even = aux[10:11, :]

    def shift(v, delta):
        # result[:, m] = v[:, m + delta]; wrapped positions masked by callers.
        amt = (sgn * delta) % M
        if amt == 0:
            return v
        return pltpu.roll(v, amt, axis=1)

    def conv3x3(v, w_mat, b_col):
        # v: (Cpad, M) with Cpad a multiple of 8.  One matmul over 9*Cpad taps.
        c = v.shape[0]
        k = 0
        for dh in (-1, 0, 1):
            for dw in (-1, 0, 1):
                tap_ref[k * c:(k + 1) * c, :] = (
                    shift(v, dh * W + dw) * aux[k:k + 1, :])
                k += 1
        return jnp.dot(w_mat, tap_ref[0:9 * c, :],
                       preferred_element_type=f32, precision=_PREC) + b_col

    # ---- conv1 (3x3, pad 1) + BatchNorm(train stats) + ReLU ----------------
    c1 = conv3x3(x_ref[...], w1_ref[...], b1_ref[...])            # (15, M)
    mean = jnp.mean(c1, axis=1, keepdims=True)
    var = jnp.mean(c1 * c1, axis=1, keepdims=True) - mean * mean
    r1 = jnp.maximum((c1 - mean) * lax.rsqrt(var + _EPS) * g_ref[...]
                     + be_ref[...], 0.0)                          # (15, M)

    # ---- 2x2 max-pool, kept at full resolution ----------------------------
    hnb = w_even * shift(r1, 1) + (1.0 - w_even) * shift(r1, -1)
    hmax = jnp.maximum(r1, hnb)
    vnb = h_even * shift(hmax, W) + (1.0 - h_even) * shift(hmax, -W)
    mpu = jnp.maximum(hmax, vnb)                                  # (15, M)

    # ---- folded ConvTranspose2d(2,2) + cat + 1x1 conv2 (padded 10 -> 16) ---
    y = jnp.dot(w2r_ref[...], r1, preferred_element_type=f32,
                precision=_PREC) + bf_ref[...]                    # (16, M)
    for k in range(4):
        y = y + aux[11 + k:12 + k, :] * jnp.dot(
            wfold_ref[k], mpu, preferred_element_type=f32, precision=_PREC)

    # ---- conv3 on both halves at once (block-diagonal weight) -> cat -------
    ycat = conv3x3(y, w3_ref[...], b3_ref[...])                   # (20, M)
    ycat_ref[...] = ycat

    # ---- conv4: 1x1 conv over the batch axis of channel 0 ------------------
    t = w4_ref[...] * ycat[0:1, :]                                # (1, M)
    o4 = b4_ref[...]
    for n in range(N):
        o4 = o4 + t[0:1, n * HW:(n + 1) * HW]
    o4_ref[...] = o4


def _full_spec(a):
    zeros = (0,) * a.ndim
    return pl.BlockSpec(a.shape, lambda i, z=zeros: z)


# ------------------------------------------------------------------------
# Host-side wrapper: layout plumbing + weight folding, one pallas_call.
# ------------------------------------------------------------------------
def forward(x_nchw, p):
    N, Cin, H, W = x_nchw.shape
    assert H % 2 == 0 and W % 2 == 0, "maxpool/convT fold assumes even H, W"
    M = N * H * W
    HW = H * W
    f32 = jnp.float32

    # activations: channels on sublanes, pixels (n*H*W) on lanes
    cpad = -(-Cin // 8) * 8
    x_cm = jnp.transpose(x_nchw, (1, 0, 2, 3)).reshape(Cin, M)
    x_pad = jnp.pad(x_cm, ((0, cpad - Cin), (0, 0))).astype(f32)        # (8, M)

    # per-lane boundary / parity masks (precomputed; kernel does no int work)
    lane = jnp.arange(M, dtype=jnp.int32)
    col = lane % W
    row = (lane // W) % H
    true_m = jnp.ones((M,), bool)
    hmask = {-1: row >= 1, 0: true_m, 1: row <= H - 2}
    wmask = {-1: col >= 1, 0: true_m, 1: col <= W - 2}
    tap_masks = [(hmask[dh] & wmask[dw]).astype(f32)
                 for dh in (-1, 0, 1) for dw in (-1, 0, 1)]              # 9
    h_even = (row % 2 == 0).astype(f32)
    w_even = (col % 2 == 0).astype(f32)
    par = [h_even * w_even, h_even * (1.0 - w_even),
           (1.0 - h_even) * w_even, (1.0 - h_even) * (1.0 - w_even)]     # 4
    aux = jnp.stack(tap_masks + [w_even, h_even] + par
                    + [jnp.zeros((M,), f32)], axis=0)                    # (16, M)

    # conv1 weight: (15, 9*cpad), tap-major, channel-padded
    w1r = jnp.transpose(p["w1"], (0, 2, 3, 1))                          # (15,3,3,Cin)
    w1m = jnp.pad(w1r, ((0, 0), (0, 0), (0, 0), (0, cpad - Cin))
                  ).reshape(15, 9 * cpad)
    b1 = p["b1"].reshape(15, 1)
    g = p["gamma1"].reshape(15, 1)
    be = p["beta1"].reshape(15, 1)

    # fold convT(2,2) + cat + 1x1 conv2; pad out-channels 10 -> 16
    w2m = p["w2"].reshape(10, 18)
    w2a, w2r_ = w2m[:, :3], w2m[:, 3:]
    wfold = jnp.einsum("oc,kcij->ijok", w2a, p["wt1"],
                       precision=_PREC).reshape(4, 10, 15)
    wfold = jnp.pad(wfold, ((0, 0), (0, 6), (0, 0)))                    # (4,16,15)
    w2rp = jnp.pad(w2r_, ((0, 6), (0, 0)))                              # (16,15)
    bf = jnp.pad(p["b2"] + jnp.dot(w2a, p["bt1"], precision=_PREC),
                 (0, 6)).reshape(16, 1)                                 # (16,1)

    # conv3 on both chunk halves with one block-diagonal weight (20, 144)
    w3r = jnp.transpose(p["w3"], (0, 2, 3, 1))                          # (10,3,3,5)
    w3a = jnp.pad(w3r, ((0, 0), (0, 0), (0, 0), (0, 11))).reshape(10, 9 * 16)
    w3b_ = jnp.pad(w3r, ((0, 0), (0, 0), (0, 0), (5, 6))).reshape(10, 9 * 16)
    w3big = jnp.concatenate([w3a, w3b_], axis=0)                        # (20,144)
    b3b = jnp.concatenate([p["b3"], p["b3"]]).reshape(20, 1)

    # conv4 weights pre-broadcast along lanes
    w4m = jnp.broadcast_to(p["w4"].reshape(N, 1), (N, HW)).reshape(1, M)
    b4b = jnp.broadcast_to(p["b4"].reshape(1, 1), (1, HW))

    args = (x_pad, aux, w1m, b1, g, be, wfold, w2rp, bf, w3big, b3b, w4m, b4b)
    tap_rows = max(9 * cpad, 9 * 16)
    kernel = functools.partial(_fused_kernel, N=N, H=H, W=W, sgn=_roll_sign())

    ycat, o4 = pl.pallas_call(
        kernel,
        grid=(1,),
        out_shape=(jax.ShapeDtypeStruct((20, M), f32),
                   jax.ShapeDtypeStruct((1, HW), f32)),
        in_specs=[_full_spec(a) for a in args],
        out_specs=(pl.BlockSpec((20, M), lambda i: (0, 0)),
                   pl.BlockSpec((1, HW), lambda i: (0, 0))),
        scratch_shapes=[pltpu.VMEM((tap_rows, M), f32)],
        compiler_params=pltpu.CompilerParams(
            dimension_semantics=("arbitrary",)),
    )(*args)

    # unbind(dim=C) + cat(dim=0)  ==  one reshape + one concat
    rest = ycat[1:, :].reshape((ycat.shape[0] - 1) * N, H, W)
    return jnp.concatenate([o4.reshape(1, H, W), rest], axis=0)


# ------------------------------------------------------------------------
# Parameters & pure-JAX reference (NCHW, mirrors the torch forward)
# ------------------------------------------------------------------------
def init_params(key, n_batch):
    ks = jax.random.split(key, 12)
    w = lambda k, shape, s=0.1: s * jax.random.normal(k, shape, jnp.float32)
    return dict(
        w1=w(ks[0], (15, 3, 3, 3)), b1=w(ks[1], (15,), 0.05),
        gamma1=1.0 + w(ks[2], (15,), 0.1), beta1=w(ks[3], (15,), 0.1),
        wt1=w(ks[4], (15, 3, 2, 2)), bt1=w(ks[5], (3,), 0.05),
        w2=w(ks[6], (10, 18, 1, 1)), b2=w(ks[7], (10,), 0.05),
        w3=w(ks[8], (10, 5, 3, 3)), b3=w(ks[9], (10,), 0.05),
        w4=w(ks[10], (1, n_batch, 1, 1)), b4=w(ks[11], (1,), 0.05),
    )


def reference(x, p):
    dn = ("NCHW", "OIHW", "NCHW")
    cv = lambda z, w, pad: lax.conv_general_dilated(
        z, w, (1, 1), ((pad, pad), (pad, pad)), dimension_numbers=dn,
        precision=_PREC)
    c1 = cv(x, p["w1"], 1) + p["b1"][None, :, None, None]
    mean = c1.mean(axis=(0, 2, 3), keepdims=True)
    var = ((c1 - mean) ** 2).mean(axis=(0, 2, 3), keepdims=True)
    r1 = jnp.maximum((c1 - mean) * lax.rsqrt(var + _EPS)
                     * p["gamma1"][None, :, None, None]
                     + p["beta1"][None, :, None, None], 0.0)
    mp = lax.reduce_window(r1, -jnp.inf, lax.max, (1, 1, 2, 2), (1, 1, 2, 2),
                           "VALID")
    wt = jnp.transpose(p["wt1"][:, :, ::-1, ::-1], (1, 0, 2, 3))
    up = lax.conv_general_dilated(mp, wt, (1, 1), ((1, 1), (1, 1)),
                                  lhs_dilation=(2, 2), dimension_numbers=dn,
                                  precision=_PREC) \
        + p["bt1"][None, :, None, None]
    y = cv(jnp.concatenate([up, r1], axis=1), p["w2"], 0) \
        + p["b2"][None, :, None, None]
    c3 = lambda z: cv(z, p["w3"], 1) + p["b3"][None, :, None, None]
    ycat = jnp.concatenate([c3(y[:, :5]), c3(y[:, 5:])], axis=1)
    o4 = cv(ycat[:, 0][None], p["w4"], 0)[0] + p["b4"][:, None, None]
    return jnp.concatenate([o4] + [ycat[:, ci] for ci in range(1, 20)], axis=0)


if __name__ == "__main__":
    N, C, H, W = 2, 3, 16, 16            # conv4 in_channels == batch size N
    key = jax.random.PRNGKey(0)
    kx, kp = jax.random.split(key)
    x = jax.random.normal(kx, (N, C, H, W), jnp.float32)
    params = init_params(kp, N)

    _roll_sign()                          # resolve pltpu.roll convention once

    out = jax.jit(forward)(x, params)
    out = jax.block_until_ready(out)
    assert out.shape == (1 + 19 * N, H, W), out.shape

    ref = jax.block_until_ready(reference(x, params))
    err = float(jnp.max(jnp.abs(out - ref)))
    assert err < 1e-3, f"mismatch vs reference: {err}"

    print("KERNEL_OK")
</pallas_src>

<mosaic_0001>
module attributes {stable_mosaic.version = 11 : i64} {
  func.func @_probe(%arg0: memref<8x128xf32, #tpu.memory_space<vmem>>, %arg1: memref<8x128xf32, #tpu.memory_space<vmem>>) attributes {dimension_semantics = [], scalar_prefetch = 0 : i64, scratch_operands = 0 : i64, tpu.core_type = #tpu.core_type<tc>} {
    %c0 = arith.constant 0 : index
    %c0_0 = arith.constant 0 : index
    %0 = vector.load %arg0[%c0, %c0_0] : memref<8x128xf32, #tpu.memory_space<vmem>>, vector<8x128xf32>
    %c1_i32 = arith.constant 1 : i32
    %1 = tpu.dynamic_rotate %0 by %c1_i32 dim 1 : vector<8x128xf32>, i32 -> vector<8x128xf32>
    %c0_1 = arith.constant 0 : index
    %c0_2 = arith.constant 0 : index
    %2 = vector.load %arg1[%c0_1, %c0_2] : memref<8x128xf32, #tpu.memory_space<vmem>>, vector<8x128xf32>
    tpu.vector_store %arg1[%c0_1, %c0_2], %1 {strides = array<i32>} : memref<8x128xf32, #tpu.memory_space<vmem>>, vector<8x128xf32>,
    return
  }
}

</mosaic_0001>

<llo_original>
// kernel: tpu_custom_call.1
$region0: #{tpu_custom_call.1}
  #allocation0 [shape = 'u32[]', space=smem, size = 0x4, offset = 0x4, fixed_abs, tag = 'smem constant byte address 0x4 - core index']
  #allocation1 [shape = 'u32[72,128]{1,0:T(1,128)}', space=vmem, size = 0x9000, scoped, tag = 'internal scratch']
  %s0 = inlined_call_operand.hbm [shape: f32[8,128], index: 0, kind: input, shape index: {}]
  %s1 = inlined_call_operand.hbm [shape: f32[8,128], index: 1, kind: output, shape index: {}]
  %s2 = sld [smem:[#allocation0]]
  $region18: #{tpu_custom_call.1} parent=0
    _
  %s4 = ssub.s32 1, %s2
  %s5 = scalar_select 0, %s4, %s2
  $region1: #{tpu_custom_call.1} parent=0
    #allocation2 [shape = 'u8[4096]{0}', space=vmem, size = 0x1000, scoped, tag = 'input window, operand 0, single buffered']
    #allocation3 [shape = 's32[1]{0}', space=sflag, size = 0x4, scoped, tag = 'scoped memory for tpu_custom_call.1']
    #allocation4 [shape = 's32[1]{0}', space=sflag, size = 0x4, scoped, tag = 'scoped memory for tpu_custom_call.1']
    #allocation5 [shape = 'u8[4096]{0}', space=vmem, size = 0x1000, scoped, tag = 'output window, operand 0, single buffered']
    %6 = vsyncpa [#allocation3], 0
    %7 = vsyncpa [#allocation4], 0
    // Predicated region
    $region2: #{tpu_custom_call.1} parent=1 // pred_check
      _
    $region3: #{tpu_custom_call.1} parent=1 // pred_check_branch
      %9 = sbr.rel (0) target = $region5
    $region4: #{tpu_custom_call.1} parent=1 // pred_region
      %11 = vsyncadd [#allocation3], 0
      %s13 = sshll.u32 %s0, 4
      %s14 = int_to_ptr.hbm [resolvable:$true] %s13
      %s15 = sshll.u32 [#allocation2], 4
      %s16 = int_to_ptr.vmem [resolvable:$true] %s15
      %18 = dma.hbm_to_vmem [thread:$0]  %s14, 128, %s16, [#allocation3]
    $region5: #{tpu_custom_call.1} parent=1 // pred_fallthru
      _
    // Predicated region
    $region6: #{tpu_custom_call.1} parent=1 // pred_check
      _
    $region7: #{tpu_custom_call.1} parent=1 // pred_check_branch
      %20 = sbr.rel (0) target = $region9
    $region8: #{tpu_custom_call.1} parent=1 // pred_region
      %22 = dma.done [#allocation3], 128
    $region9: #{tpu_custom_call.1} parent=1 // pred_fallthru
      _
    %v23 = vld [vmem:[#allocation2] sm:$0xff]
    %24 = vrot.lane.b32.xlu0 %v23, 1
    %v25 = vpop.permute.xlu0 %24
    %26 = vst [vmem:[#allocation5] sm:$0xff] %v25
    // Predicated region
    $region10: #{tpu_custom_call.1} parent=1 // pred_check
      _
    $region11: #{tpu_custom_call.1} parent=1 // pred_check_branch
      %28 = sbr.rel (0) target = $region13
    $region12: #{tpu_custom_call.1} parent=1 // pred_region
      %30 = vsyncadd [#allocation4], 0
      %s32 = sshll.u32 [#allocation5], 4
      %s33 = int_to_ptr.vmem [resolvable:$true] %s32
      %s34 = sshll.u32 %s1, 4
      %s35 = int_to_ptr.hbm [resolvable:$true] %s34
      %37 = dma.vmem_to_hbm [thread:$0]  %s33, 128, %s35, [#allocation4]
    $region13: #{tpu_custom_call.1} parent=1 // pred_fallthru
      _
    // Predicated region
    $region14: #{tpu_custom_call.1} parent=1 // pred_check
      _
    $region15: #{tpu_custom_call.1} parent=1 // pred_check_branch
      %39 = sbr.rel (0) target = $region17
    $region16: #{tpu_custom_call.1} parent=1 // pred_region
      %41 = dma.done [#allocation4], 128
    $region17: #{tpu_custom_call.1} parent=1 // pred_fallthru
      _
    %42 = vsyncpa [#allocation3], 1
    %43 = vsyncpa [#allocation4], 1

</llo_original>
